<compile_context>
chip_gen: v6e
topology: v6e:2x2x1
jax: 0.10.0
libtpu: 0.0.40
codegen_flags: <defaults>
</compile_context>

<pallas_src>
import functools

import jax
import jax.numpy as jnp
import numpy as np
from jax import lax
from jax.experimental import pallas as pl
from jax.experimental.pallas import tpu as pltpu


def _make_kernel(op_dtype, approx_recip):
    def kernel(x1_ref, x2_ref, mbias_ref, wt_ref, b_ref, out_ref, yproj_ref):
        # Per grid step (batch b, L1-tile t):
        #   x1_ref:   (1, TL1, H)  op_dtype      x2_ref: (1, L2, H) op_dtype
        #   mbias_ref:(1, 1,  L2)  f32 additive mask (-1e30 at padded keys)
        #   wt_ref:   (H, H)       op_dtype, already transposed to (in, out)
        #   b_ref:    (1, H)       f32
        #   out_ref:  (1, TL1, H)  f32 (attention output only)
        #   yproj_ref:(L2, H)      op_dtype VMEM scratch (cached across L1 tiles)
        wt = wt_ref[...]
        bias = b_ref[...]

        # Shared relu_FC projection of the keys/values side: compute once per batch
        # element (first L1 tile) and keep it resident in VMEM scratch.
        @pl.when(pl.program_id(1) == 0)
        def _():
            yp = jnp.dot(x2_ref[0], wt, preferred_element_type=jnp.float32) + bias
            yproj_ref[...] = jnp.maximum(yp, 0.0).astype(op_dtype)

        # Query-side projection for this L1 tile.
        xp = jnp.dot(x1_ref[0], wt, preferred_element_type=jnp.float32) + bias
        xp = jnp.maximum(xp, 0.0).astype(op_dtype)

        # scores (TL1, L2): contract last dims directly — no transposed copy on the XLU.
        scores = lax.dot_general(
            xp, yproj_ref[...],
            dimension_numbers=(((1,), (1,)), ((), ())),
            preferred_element_type=jnp.float32)

        # Additive mask (broadcasts over the TL1 rows).
        scores = scores + mbias_ref[0]

        # Softmax over len2 (normalize='sumY'); elementwise math stays f32.
        m = jnp.max(scores, axis=-1, keepdims=True)
        e = jnp.exp(scores - m)
        denom = jnp.sum(e, axis=-1, keepdims=True)
        alpha = (e * pl.reciprocal(denom, approx=approx_recip)).astype(op_dtype)

        # att = alpha @ x2   (values = x2, since z defaults to y in SeqAttnMatch).
        out_ref[0] = jnp.dot(alpha, x2_ref[0],
                             preferred_element_type=jnp.float32).astype(out_ref.dtype)

    return kernel


def _pick_tile_l1(L1):
    # TODO(synk): pad irregular L1 to a tile multiple instead of falling back to one tile.
    for t in (512, 256, 128):
        if L1 >= t and L1 % t == 0:
            return t
    return L1


@functools.partial(jax.jit, static_argnames=("use_bf16", "tile_l1"))
def unidir_atten_concat(x1, x2, x2_mask, w, b, *, use_bf16=True, tile_l1=None):
    """x1: (B,L1,H) f32, x2: (B,L2,H) f32, x2_mask: (B,L2) bool (True = padded),
       w: (H,H) PyTorch Linear weight (out,in), b: (H,). Returns (B,L1,2H) f32."""
    B, L1, H = x1.shape
    _, L2, _ = x2.shape
    op_dtype = jnp.bfloat16 if use_bf16 else jnp.float32

    tl1 = tile_l1 if tile_l1 is not None else _pick_tile_l1(L1)
    assert L1 % tl1 == 0, "L1 must be divisible by the L1 tile size"
    nt = L1 // tl1

    # Host-side prep: pre-transposed weight in MXU-friendly (in,out) layout, f32 bias,
    # additive -1e30 mask, and matmul-operand dtype for the sequence inputs.
    wt = w.T.astype(op_dtype)
    bias = b.reshape(1, H).astype(jnp.float32)
    mask_bias = jnp.where(x2_mask, jnp.float32(-1e30), jnp.float32(0.0)).reshape(B, 1, L2)
    x1_op = x1.astype(op_dtype)
    x2_op = x2.astype(op_dtype)

    kernel = _make_kernel(op_dtype, approx_recip=use_bf16)

    att = pl.pallas_call(
        kernel,
        out_shape=jax.ShapeDtypeStruct((B, L1, H), x1.dtype),
        grid_spec=pltpu.PrefetchScalarGridSpec(
            num_scalar_prefetch=0,
            grid=(B, nt),
            in_specs=[
                pl.BlockSpec((1, tl1, H), lambda bb, tt: (bb, tt, 0)),   # x1 tile
                pl.BlockSpec((1, L2, H), lambda bb, tt: (bb, 0, 0)),     # x2 (full len2)
                pl.BlockSpec((1, 1, L2), lambda bb, tt: (bb, 0, 0)),     # additive mask
                pl.BlockSpec((H, H), lambda bb, tt: (0, 0)),             # W^T (resident)
                pl.BlockSpec((1, H), lambda bb, tt: (0, 0)),             # bias (resident)
            ],
            out_specs=pl.BlockSpec((1, tl1, H), lambda bb, tt: (bb, tt, 0)),
            scratch_shapes=[pltpu.VMEM((L2, H), op_dtype)],              # cached y_proj
        ),
        compiler_params=pltpu.CompilerParams(
            # L1-tile axis must stay sequential per core because y_proj is cached
            # in scratch at tile 0; batch axis is megacore-parallel.
            dimension_semantics=("parallel", "arbitrary")),
    )(x1_op, x2_op, mask_bias, wt, bias)

    # inter_att_concat == 'concat': the x1 passthrough is done here, not in the kernel.
    return jnp.concatenate([x1, att], axis=-1)


def _reference(x1, x2, x2_mask, w, b, op_dtype=jnp.float32):
    """Pure-JAX reference. With op_dtype=f32 this is the exact module semantics;
    with op_dtype=bf16 it mirrors the kernel's MXU-operand casts."""
    wt = w.T.astype(op_dtype)
    x1o = x1.astype(op_dtype)
    x2o = x2.astype(op_dtype)
    xp = jax.nn.relu(jnp.einsum("bld,de->ble", x1o, wt,
                                preferred_element_type=jnp.float32) + b)
    yp = jax.nn.relu(jnp.einsum("bld,de->ble", x2o, wt,
                                preferred_element_type=jnp.float32) + b)
    scores = jnp.einsum("bid,bjd->bij", xp.astype(op_dtype), yp.astype(op_dtype),
                        preferred_element_type=jnp.float32)
    scores = jnp.where(x2_mask[:, None, :], -jnp.inf, scores)
    alpha = jax.nn.softmax(scores, axis=-1).astype(op_dtype)
    att = jnp.einsum("bij,bjd->bid", alpha, x2o, preferred_element_type=jnp.float32)
    return jnp.concatenate([x1, att.astype(x1.dtype)], axis=-1)


def _make_inputs(key, B, L1, L2, H, n_pad):
    k1, k2, kw, kb = jax.random.split(key, 4)
    x1 = jax.random.normal(k1, (B, L1, H), dtype=jnp.float32)
    x2 = jax.random.normal(k2, (B, L2, H), dtype=jnp.float32)
    # Deterministic nn.Linear(H,H) init (uniform +/- 1/sqrt(H)), PyTorch layout (out,in).
    bound = 1.0 / np.sqrt(H)
    w = jax.random.uniform(kw, (H, H), minval=-bound, maxval=bound, dtype=jnp.float32)
    b = jax.random.uniform(kb, (H,), minval=-bound, maxval=bound, dtype=jnp.float32)
    # Mask (True = padded): last n_pad positions of x2 are padding.
    x2_mask = jnp.zeros((B, L2), dtype=bool).at[:, L2 - n_pad:].set(True)
    return x1, x2, x2_mask, w, b


if __name__ == "__main__":
    key = jax.random.PRNGKey(0)
    k_small, k_big = jax.random.split(key)

    # --- small shapes: exact f32 path (tight tolerance) + default bf16 path ---
    B, L1, L2, H = 2, 8, 8, 32
    x1, x2, x2_mask, w, b = _make_inputs(k_small, B, L1, L2, H, n_pad=2)

    out_f32 = jax.block_until_ready(
        unidir_atten_concat(x1, x2, x2_mask, w, b, use_bf16=False))
    assert out_f32.shape == (B, L1, 2 * H)
    np.testing.assert_allclose(
        np.asarray(out_f32),
        np.asarray(_reference(x1, x2, x2_mask, w, b, jnp.float32)),
        rtol=1e-5, atol=1e-5)

    out_bf16 = jax.block_until_ready(unidir_atten_concat(x1, x2, x2_mask, w, b))
    np.testing.assert_allclose(
        np.asarray(out_bf16),
        np.asarray(_reference(x1, x2, x2_mask, w, b, jnp.bfloat16)),
        rtol=2e-2, atol=2e-2)

    # --- larger shapes: exercises the L1-tile grid axis and the cached y_proj scratch ---
    B2, L1b, L2b, Hb = 2, 256, 128, 128
    x1b, x2b, maskb, wb, bb = _make_inputs(k_big, B2, L1b, L2b, Hb, n_pad=17)
    out_b = jax.block_until_ready(
        unidir_atten_concat(x1b, x2b, maskb, wb, bb, tile_l1=128))
    assert out_b.shape == (B2, L1b, 2 * Hb)
    np.testing.assert_allclose(
        np.asarray(out_b),
        np.asarray(_reference(x1b, x2b, maskb, wb, bb, jnp.bfloat16)),
        rtol=2e-2, atol=2e-2)

    print("KERNEL_OK")
</pallas_src>

<mosaic_0001>
module attributes {stable_mosaic.version = 11 : i64} {
  func.func @kernel(%arg0: i32, %arg1: i32, %arg2: memref<1x8x32xf32, #tpu.memory_space<vmem>>, %arg3: memref<1x8x32xf32, #tpu.memory_space<vmem>>, %arg4: memref<1x1x8xf32, #tpu.memory_space<vmem>>, %arg5: memref<32x32xf32, #tpu.memory_space<vmem>>, %arg6: memref<1x32xf32, #tpu.memory_space<vmem>>, %arg7: memref<1x8x32xf32, #tpu.memory_space<vmem>>, %arg8: memref<8x32xf32, #tpu.memory_space<vmem>>) attributes {dimension_semantics = [#tpu.dimension_semantics<parallel>, #tpu.dimension_semantics<arbitrary>], iteration_bounds = array<i64: 2, 1>, scalar_prefetch = 0 : i64, scratch_operands = 1 : i64, tpu.core_type = #tpu.core_type<tc>, window_params = [{transform_indices = @transform_0, window_bounds = array<i64: 1, 8, 32>}, {transform_indices = @transform_1, window_bounds = array<i64: 1, 8, 32>}, {transform_indices = @transform_2, window_bounds = array<i64: 1, 1, 8>}, {pipeline_mode = #tpu.pipeline_mode<synchronous>, transform_indices = @transform_3, window_bounds = array<i64: 32, 32>}, {pipeline_mode = #tpu.pipeline_mode<synchronous>, transform_indices = @transform_4, window_bounds = array<i64: 1, 32>}, {transform_indices = @transform_5, window_bounds = array<i64: 1, 8, 32>}]} {
    %c0 = arith.constant 0 : index
    %c0_0 = arith.constant 0 : index
    %0 = vector.load %arg5[%c0, %c0_0] : memref<32x32xf32, #tpu.memory_space<vmem>>, vector<32x32xf32>
    %c0_1 = arith.constant 0 : index
    %c0_2 = arith.constant 0 : index
    %1 = vector.load %arg6[%c0_1, %c0_2] : memref<1x32xf32, #tpu.memory_space<vmem>>, vector<1x32xf32>
    %c0_i32 = arith.constant 0 : i32
    %2 = arith.cmpi eq, %arg1, %c0_i32 : i32
    %3 = arith.extui %2 : i1 to i32
    %c0_i32_3 = arith.constant 0 : i32
    %4 = arith.cmpi ne, %3, %c0_i32_3 : i32
    scf.if %4 {
      %c0_23 = arith.constant 0 : index
      %c0_24 = arith.constant 0 : index
      %c0_25 = arith.constant 0 : index
      %34 = vector.load %arg3[%c0_23, %c0_24, %c0_25] : memref<1x8x32xf32, #tpu.memory_space<vmem>>, vector<1x8x32xf32>
      %35 = vector.shape_cast %34 : vector<1x8x32xf32> to vector<8x32xf32>
      %cst_26 = arith.constant dense<0.000000e+00> : vector<8x32xf32>
      %36 = tpu.matmul %35, %0, %cst_26 {dimension_numbers = #tpu.dot_dimension_numbers<[1], [0], [0], [1], [0, 0, 1, 1], [], []>} : vector<8x32xf32>, vector<32x32xf32>, vector<8x32xf32> -> vector<8x32xf32>
      %37 = vector.broadcast %1 : vector<1x32xf32> to vector<8x32xf32>
      %38 = arith.addf %36, %37 : vector<8x32xf32>
      %cst_27 = arith.constant 0.000000e+00 : f32
      %39 = vector.broadcast %cst_27 : f32 to vector<8x32xf32>
      %40 = arith.maximumf %38, %39 : vector<8x32xf32>
      %c0_28 = arith.constant 0 : index
      %c0_29 = arith.constant 0 : index
      %41 = vector.load %arg8[%c0_28, %c0_29] : memref<8x32xf32, #tpu.memory_space<vmem>>, vector<8x32xf32>
      tpu.vector_store %arg8[%c0_28, %c0_29], %40 {strides = array<i32>} : memref<8x32xf32, #tpu.memory_space<vmem>>, vector<8x32xf32>,
    } else {
    }
    %c0_4 = arith.constant 0 : index
    %c0_5 = arith.constant 0 : index
    %c0_6 = arith.constant 0 : index
    %5 = vector.load %arg2[%c0_4, %c0_5, %c0_6] : memref<1x8x32xf32, #tpu.memory_space<vmem>>, vector<1x8x32xf32>
    %6 = vector.shape_cast %5 : vector<1x8x32xf32> to vector<8x32xf32>
    %cst = arith.constant dense<0.000000e+00> : vector<8x32xf32>
    %7 = tpu.matmul %6, %0, %cst {dimension_numbers = #tpu.dot_dimension_numbers<[1], [0], [0], [1], [0, 0, 1, 1], [], []>} : vector<8x32xf32>, vector<32x32xf32>, vector<8x32xf32> -> vector<8x32xf32>
    %8 = vector.broadcast %1 : vector<1x32xf32> to vector<8x32xf32>
    %9 = arith.addf %7, %8 : vector<8x32xf32>
    %cst_7 = arith.constant 0.000000e+00 : f32
    %10 = vector.broadcast %cst_7 : f32 to vector<8x32xf32>
    %11 = arith.maximumf %9, %10 : vector<8x32xf32>
    %c0_8 = arith.constant 0 : index
    %c0_9 = arith.constant 0 : index
    %12 = vector.load %arg8[%c0_8, %c0_9] : memref<8x32xf32, #tpu.memory_space<vmem>>, vector<8x32xf32>
    %cst_10 = arith.constant dense<0.000000e+00> : vector<8x8xf32>
    %13 = tpu.matmul %11, %12, %cst_10 {dimension_numbers = #tpu.dot_dimension_numbers<[1], [1], [0], [0], [0, 0, 1, 0], [], []>} : vector<8x32xf32>, vector<8x32xf32>, vector<8x8xf32> -> vector<8x8xf32>
    %c0_11 = arith.constant 0 : index
    %c0_12 = arith.constant 0 : index
    %c0_13 = arith.constant 0 : index
    %14 = vector.load %arg4[%c0_11, %c0_12, %c0_13] : memref<1x1x8xf32, #tpu.memory_space<vmem>>, vector<1x1x8xf32>
    %15 = vector.shape_cast %14 : vector<1x1x8xf32> to vector<1x8xf32>
    %16 = vector.broadcast %15 : vector<1x8xf32> to vector<8x8xf32>
    %17 = arith.addf %13, %16 : vector<8x8xf32>
    %cst_14 = arith.constant dense<0xFF800000> : vector<8xf32>
    %18 = vector.multi_reduction <maximumf>, %17, %cst_14 [1] : vector<8x8xf32> to vector<8xf32>
    %19 = vector.shape_cast %18 : vector<8xf32> to vector<8x1xf32>
    %20 = vector.broadcast %19 : vector<8x1xf32> to vector<8x8xf32>
    %21 = arith.subf %17, %20 : vector<8x8xf32>
    %22 = math.exp %21 : vector<8x8xf32>
    %cst_15 = arith.constant dense<0.000000e+00> : vector<8xf32>
    %23 = vector.multi_reduction <add>, %22, %cst_15 [1] : vector<8x8xf32> to vector<8xf32>
    %24 = vector.shape_cast %23 : vector<8xf32> to vector<8x1xf32>
    %25 = tpu.reciprocal %24 : vector<8x1xf32> -> vector<8x1xf32>
    %26 = vector.broadcast %25 : vector<8x1xf32> to vector<8x8xf32>
    %27 = arith.mulf %22, %26 : vector<8x8xf32>
    %c0_16 = arith.constant 0 : index
    %c0_17 = arith.constant 0 : index
    %c0_18 = arith.constant 0 : index
    %28 = vector.load %arg3[%c0_16, %c0_17, %c0_18] : memref<1x8x32xf32, #tpu.memory_space<vmem>>, vector<1x8x32xf32>
    %29 = vector.shape_cast %28 : vector<1x8x32xf32> to vector<8x32xf32>
    %cst_19 = arith.constant dense<0.000000e+00> : vector<8x32xf32>
    %30 = tpu.matmul %27, %29, %cst_19 {dimension_numbers = #tpu.dot_dimension_numbers<[1], [0], [0], [1], [0, 0, 1, 1], [], []>} : vector<8x8xf32>, vector<8x32xf32>, vector<8x32xf32> -> vector<8x32xf32>
    %c0_20 = arith.constant 0 : index
    %c0_21 = arith.constant 0 : index
    %c0_22 = arith.constant 0 : index
    %31 = vector.load %arg7[%c0_20, %c0_21, %c0_22] : memref<1x8x32xf32, #tpu.memory_space<vmem>>, vector<1x8x32xf32>
    %32 = vector.shape_cast %31 : vector<1x8x32xf32> to vector<8x32xf32>
    %33 = vector.shape_cast %30 : vector<8x32xf32> to vector<1x8x32xf32>
    tpu.vector_store %arg7[%c0_20, %c0_21, %c0_22], %33 {strides = array<i32>} : memref<1x8x32xf32, #tpu.memory_space<vmem>>, vector<1x8x32xf32>,
    return
  }
  func.func @transform_0(%arg0: i32, %arg1: i32) -> (i32, i32, i32) {
    %c0_i32 = arith.constant 0 : i32
    %c0_i32_0 = arith.constant 0 : i32
    return %arg0, %arg1, %c0_i32 : i32, i32, i32
  }
  func.func @transform_1(%arg0: i32, %arg1: i32) -> (i32, i32, i32) {
    %c0_i32 = arith.constant 0 : i32
    %c0_i32_0 = arith.constant 0 : i32
    %c0_i32_1 = arith.constant 0 : i32
    return %arg0, %c0_i32, %c0_i32_0 : i32, i32, i32
  }
  func.func @transform_2(%arg0: i32, %arg1: i32) -> (i32, i32, i32) {
    %c0_i32 = arith.constant 0 : i32
    %c0_i32_0 = arith.constant 0 : i32
    %c0_i32_1 = arith.constant 0 : i32
    return %arg0, %c0_i32, %c0_i32_0 : i32, i32, i32
  }
  func.func @transform_3(%arg0: i32, %arg1: i32) -> (i32, i32) {
    %c0_i32 = arith.constant 0 : i32
    %c0_i32_0 = arith.constant 0 : i32
    %c0_i32_1 = arith.constant 0 : i32
    return %c0_i32, %c0_i32_0 : i32, i32
  }
  func.func @transform_4(%arg0: i32, %arg1: i32) -> (i32, i32) {
    %c0_i32 = arith.constant 0 : i32
    %c0_i32_0 = arith.constant 0 : i32
    %c0_i32_1 = arith.constant 0 : i32
    return %c0_i32, %c0_i32_0 : i32, i32
  }
  func.func @transform_5(%arg0: i32, %arg1: i32) -> (i32, i32, i32) {
    %c0_i32 = arith.constant 0 : i32
    %c0_i32_0 = arith.constant 0 : i32
    return %arg0, %arg1, %c0_i32 : i32, i32, i32
  }
}

</mosaic_0001>

<llo_original>
// kernel: unidir_atten_concat.1
$region0: #{unidir_atten_concat.1}
  #allocation0 [shape = 'u32[]', space=smem, size = 0x4, offset = 0x4, fixed_abs, tag = 'smem constant byte address 0x4 - core index']
  #allocation1 [shape = 'u32[144,128]{1,0:T(1,128)}', space=vmem, size = 0x12000, scoped, tag = 'internal scratch']
  #allocation2 [shape = 'f32[8,32]{1,0:T(8,128)}', space=vmem, size = 0x1000, scoped, tag = 'scratch operand']
  %s0 = inlined_call_operand.vmem [shape: f32[2,8,32], index: 0, kind: input, shape index: {}]
  %s1 = inlined_call_operand.vmem [shape: f32[2,8,32], index: 1, kind: input, shape index: {}]
  %s2 = inlined_call_operand.vmem [shape: f32[2,1,8], index: 2, kind: input, shape index: {}]
  %s3 = inlined_call_operand.vmem [shape: f32[32,32], index: 3, kind: input, shape index: {}]
  %s4 = inlined_call_operand.vmem [shape: f32[1,32], index: 4, kind: input, shape index: {}]
  %s5 = inlined_call_operand.vmem [shape: f32[2,8,32], index: 5, kind: output, shape index: {}]
  %s6 = sld [smem:[#allocation0]]
  $region57: #{unidir_atten_concat.1} parent=0
    _
  %s8 = ssub.s32 1, %s6
  %s9 = scalar_select 0, %s8, %s6
  loop: start=0, step=1, limit=4
  $region2: #{unidir_atten_concat.1} parent=0 // loop_pre_header
    _
  $region3: #{unidir_atten_concat.1} parent=0 // loop_header
    %s11 = sphi 0, %s15
    %p12 = scmp.ge.s32.totalorder %s11, 4
    %s18 = sphi 0, %s30
    %s19 = sphi 0, %s26
    %s20 = sphi 0, %s18
    %s21 = sphi 0, %s19
    %s22 = sphi 0, %s20
    %s23 = sphi 0, %s21
    %s35 = sphi 0, %s37
    %s38 = sphi 0, %s35
    %s39 = sphi 0, %s38
    %s55 = sphi 0, %s39
    %s61 = sphi 0, %s63
    %s64 = sphi 0, %s61
    %s65 = sphi 0, %s64
    %s81 = sphi 0, %s65
    %s87 = sphi 0, %s89
    %s90 = sphi 0, %s87
    %s91 = sphi 0, %s90
    %s107 = sphi 0, %s91
    %s111 = sphi 0, %s111
    %s113 = sphi 0, %s111
    %s114 = sphi 0, %s113
    %s128 = sphi 0, %s114
    %s132 = sphi 0, %s132
    %s134 = sphi 0, %s132
    %s135 = sphi 0, %s134
    %s149 = sphi 0, %s135
    %s157 = sphi 0, %s159
    %s160 = sphi 0, %s157
    %s161 = sphi 0, %s160
    %s177 = sphi 0, %s161
  $region4: #{unidir_atten_concat.1} parent=0 // loop_header_branch
    %14 = sbr.rel (%p12) target = $region8
  $region5: #{unidir_atten_concat.1} parent=0 // loop_body
    %s16 = ssub.s32 %s11, 1
    %s17 = ssub.s32 %s11, 2
    %s24 = sadd.s32 1, %s19
    %p25 = scmp.ge.s32.totalorder %s24, 1
    %s26 = scalar_select %p25, 0, %s24
    %s27 = sadd.s32 1, %s18
    %s28 = scalar_select %p25, %s27, %s18
    %p29 = scmp.ge.s32.totalorder %s28, 2
    %s30 = scalar_select %p29, 0, %s28
    %s31 = ssub.s32 %s18, %s30
    %s32 = ssub.s32 %s19, %s26
    %s33 = sor.u32 %s31, %s32
    %p34 = scmp.eq.s32.totalorder %s33, 0
    %s36 = sadd.s32 %s35, 1
    %s37 = scalar_select %p34, %s35, %s36
    %p40 = pneg %p34
    %p41 = scmp.eq.s32.totalorder %s11, 1
    %p42 = por %p40, %p41
    %p43 = scmp.ne.s32.totalorder %s35, %s38
    %p44 = scmp.eq.s32.totalorder %s11, 0
    %p45 = por %p43, %p44
    %p46 = scmp.ne.s32.totalorder %s35, %s38
    %p47 = scmp.eq.s32.totalorder %s16, 1
    %p48 = por %p46, %p47
    %p49 = scmp.ne.s32.totalorder %s38, %s39
    %p50 = scmp.eq.s32.totalorder %s16, 0
    %p51 = por %p49, %p50
    %p52 = scmp.ne.s32.totalorder %s38, %s39
    %p53 = scmp.eq.s32.totalorder %s17, 1
    %p54 = por %p52, %p53
    %p56 = scmp.ne.s32.totalorder %s39, %s55
    %p57 = scmp.eq.s32.totalorder %s17, 0
    %p58 = por %p56, %p57
    %s59 = ssub.s32 %s18, %s30
    %p60 = scmp.eq.s32.totalorder %s59, 0
    %s62 = sadd.s32 %s61, 1
    %s63 = scalar_select %p60, %s61, %s62
    %p66 = pneg %p60
    %p67 = scmp.eq.s32.totalorder %s11, 1
    %p68 = por %p66, %p67
    %p69 = scmp.ne.s32.totalorder %s61, %s64
    %p70 = scmp.eq.s32.totalorder %s11, 0
    %p71 = por %p69, %p70
    %p72 = scmp.ne.s32.totalorder %s61, %s64
    %p73 = scmp.eq.s32.totalorder %s16, 1
    %p74 = por %p72, %p73
    %p75 = scmp.ne.s32.totalorder %s64, %s65
    %p76 = scmp.eq.s32.totalorder %s16, 0
    %p77 = por %p75, %p76
    %p78 = scmp.ne.s32.totalorder %s64, %s65
    %p79 = scmp.eq.s32.totalorder %s17, 1
    %p80 = por %p78, %p79
    %p82 = scmp.ne.s32.totalorder %s65, %s81
    %p83 = scmp.eq.s32.totalorder %s17, 0
    %p84 = por %p82, %p83
    %s85 = ssub.s32 %s18, %s30
    %p86 = scmp.eq.s32.totalorder %s85, 0
    %s88 = sadd.s32 %s87, 1
    %s89 = scalar_select %p86, %s87, %s88
    %p92 = pneg %p86
    %p93 = scmp.eq.s32.totalorder %s11, 1
    %p94 = por %p92, %p93
    %p95 = scmp.ne.s32.totalorder %s87, %s90
    %p96 = scmp.eq.s32.totalorder %s11, 0
    %p97 = por %p95, %p96
    %p98 = scmp.ne.s32.totalorder %s87, %s90
    %p99 = scmp.eq.s32.totalorder %s16, 1
    %p100 = por %p98, %p99
    %p101 = scmp.ne.s32.totalorder %s90, %s91
    %p102 = scmp.eq.s32.totalorder %s16, 0
    %p103 = por %p101, %p102
    %p104 = scmp.ne.s32.totalorder %s90, %s91
    %p105 = scmp.eq.s32.totalorder %s17, 1
    %p106 = por %p104, %p105
    %p108 = scmp.ne.s32.totalorder %s91, %s107
    %p109 = scmp.eq.s32.totalorder %s17, 0
    %p110 = por %p108, %p109
    %s112 = sadd.s32 %s111, 1
    %p115 = scmp.eq.s32.totalorder %s11, 1
    %p116 = scmp.ne.s32.totalorder %s111, %s113
    %p117 = scmp.eq.s32.totalorder %s11, 0
    %p118 = por %p116, %p117
    %p119 = scmp.ne.s32.totalorder %s111, %s113
    %p120 = scmp.eq.s32.totalorder %s16, 1
    %p121 = por %p119, %p120
    %p122 = scmp.ne.s32.totalorder %s113, %s114
    %p123 = scmp.eq.s32.totalorder %s16, 0
    %p124 = por %p122, %p123
    %p125 = scmp.ne.s32.totalorder %s113, %s114
    %p126 = scmp.eq.s32.totalorder %s17, 1
    %p127 = por %p125, %p126
    %p129 = scmp.ne.s32.totalorder %s114, %s128
    %p130 = scmp.eq.s32.totalorder %s17, 0
    %p131 = por %p129, %p130
    %s133 = sadd.s32 %s132, 1
    %p136 = scmp.eq.s32.totalorder %s11, 1
    %p137 = scmp.ne.s32.totalorder %s132, %s134
    %p138 = scmp.eq.s32.totalorder %s11, 0
    %p139 = por %p137, %p138
    %p140 = scmp.ne.s32.totalorder %s132, %s134
    %p141 = scmp.eq.s32.totalorder %s16, 1
    %p142 = por %p140, %p141
    %p143 = scmp.ne.s32.totalorder %s134, %s135
    %p144 = scmp.eq.s32.totalorder %s16, 0
    %p145 = por %p143, %p144
    %p146 = scmp.ne.s32.totalorder %s134, %s135
    %p147 = scmp.eq.s32.totalorder %s17, 1
    %p148 = por %p146, %p147
    %p150 = scmp.ne.s32.totalorder %s135, %s149
    %p151 = scmp.eq.s32.totalorder %s17, 0
    %p152 = por %p150, %p151
    %s153 = ssub.s32 %s18, %s30
    %s154 = ssub.s32 %s19, %s26
    %s155 = sor.u32 %s153, %s154
    %p156 = scmp.eq.s32.totalorder %s155, 0
    %s158 = sadd.s32 %s157, 1
    %s159 = scalar_select %p156, %s157, %s158
    %p162 = pneg %p156
    %p163 = scmp.eq.s32.totalorder %s11, 1
    %p164 = por %p162, %p163
    %p165 = scmp.ne.s32.totalorder %s157, %s160
    %p166 = scmp.eq.s32.totalorder %s11, 0
    %p167 = por %p165, %p166
    %p168 = scmp.ne.s32.totalorder %s157, %s160
    %p169 = scmp.eq.s32.totalorder %s16, 1
    %p170 = por %p168, %p169
    %p171 = scmp.ne.s32.totalorder %s160, %s161
    %p172 = scmp.eq.s32.totalorder %s16, 0
    %p173 = por %p171, %p172
    %p174 = scmp.ne.s32.totalorder %s160, %s161
    %p175 = scmp.eq.s32.totalorder %s17, 1
    %p176 = por %p174, %p175
    %p178 = scmp.ne.s32.totalorder %s161, %s177
    %p179 = scmp.eq.s32.totalorder %s17, 0
    %p180 = por %p178, %p179
    %p181 = scmp.le.s32.totalorder 1, %s11
    %p182 = scmp.lt.s32.totalorder %s11, 3
    %p183 = pnand %p181, %p182
    %p184 = pneg %p183
    // Predicated region
    $region9: #{unidir_atten_concat.1} parent=5 // pred_check
      _
    $region10: #{unidir_atten_concat.1} parent=5 // pred_check_branch
      %186 = sbr.rel (%p183) target = $region12
    $region11: #{unidir_atten_concat.1} parent=5 // pred_region
      %s187 = ssub.s32 %s11, 1
      // Predicated region
      $region13: #{unidir_atten_concat.1} parent=11 // pred_check
        %p188 = pneg %p124
      $region14: #{unidir_atten_concat.1} parent=11 // pred_check_branch
        %190 = sbr.rel (%p188) target = $region16
      $region15: #{unidir_atten_concat.1} parent=11 // pred_region
        _
      $region16: #{unidir_atten_concat.1} parent=11 // pred_fallthru
        _
      // Predicated region
      $region17: #{unidir_atten_concat.1} parent=11 // pred_check
        %p191 = pneg %p145
      $region18: #{unidir_atten_concat.1} parent=11 // pred_check_branch
        %193 = sbr.rel (%p191) target = $region20
      $region19: #{unidir_atten_concat.1} parent=11 // pred_region
        _
      $region20: #{unidir_atten_concat.1} parent=11 // pred_fallthru
        _
    $region12: #{unidir_atten_concat.1} parent=5 // pred_fallthru
      _
    %p194 = scmp.lt.s32.totalorder %s11, 2
    // Predicated region
    $region21: #{unidir_atten_concat.1} parent=5 // pred_check
      %p195 = pneg %p194
    $region22: #{unidir_atten_concat.1} parent=5 // pred_check_branch
      %197 = sbr.rel (%p195) target = $region24
    $region23: #{unidir_atten_concat.1} parent=5 // pred_region
      // Predicated region
      $region25: #{unidir_atten_concat.1} parent=23 // pred_check
        %p198 = pneg %p45
      $region26: #{unidir_atten_concat.1} parent=23 // pred_check_branch
        %200 = sbr.rel (%p198) target = $region28
      $region27: #{unidir_atten_concat.1} parent=23 // pred_region
        %p201 = scmp.lt.s32.totalorder %s18, 1
        %s202 = scalar_select %p201, %s18, 1
        %p203 = scmp.lt.s32.totalorder %s19, 0
        %s204 = scalar_select %p203, %s19, 0
        %s205 = sadd.s32 %s204, %s202
        %s206 = smul.addr %s205, 8
        %s207 = scalar_lea.vmem %s0, %s206
      $region28: #{unidir_atten_concat.1} parent=23 // pred_fallthru
        _
      // Predicated region
      $region29: #{unidir_atten_concat.1} parent=23 // pred_check
        %p208 = pneg %p71
      $region30: #{unidir_atten_concat.1} parent=23 // pred_check_branch
        %210 = sbr.rel (%p208) target = $region32
      $region31: #{unidir_atten_concat.1} parent=23 // pred_region
        %p211 = scmp.lt.s32.totalorder %s18, 1
        %s212 = scalar_select %p211, %s18, 1
        %s213 = smul.addr %s212, 8
        %s214 = scalar_lea.vmem %s1, %s213
      $region32: #{unidir_atten_concat.1} parent=23 // pred_fallthru
        _
      // Predicated region
      $region33: #{unidir_atten_concat.1} parent=23 // pred_check
        %p215 = pneg %p97
      $region34: #{unidir_atten_concat.1} parent=23 // pred_check_branch
        %217 = sbr.rel (%p215) target = $region36
      $region35: #{unidir_atten_concat.1} parent=23 // pred_region
        %p218 = scmp.lt.s32.totalorder %s18, 1
        %s219 = scalar_select %p218, %s18, 1
        %s220 = scalar_lea.vmem %s2, %s219
      $region36: #{unidir_atten_concat.1} parent=23 // pred_fallthru
        _
    $region24: #{unidir_atten_concat.1} parent=5 // pred_fallthru
      _
    %p221 = scmp.le.s32.totalorder 1, %s11
    %p222 = scmp.lt.s32.totalorder %s11, 3
    %p223 = pnand %p221, %p222
    %p224 = pneg %p223
    // Predicated region
    $region37: #{unidir_atten_concat.1} parent=5 // pred_check
      _
    $region38: #{unidir_atten_concat.1} parent=5 // pred_check_branch
      %226 = sbr.rel (%p223) target = $region40
    $region39: #{unidir_atten_concat.1} parent=5 // pred_region
      %s227 = ssub.s32 %s11, 1
      %p228 = scmp.lt.s32.totalorder %s20, 1
      %s229 = scalar_select %p228, %s20, 1
      %p230 = scmp.lt.s32.totalorder %s21, 0
      %s231 = scalar_select %p230, %s21, 0
      %s232 = sadd.s32 %s231, %s229
      %s233 = smul.addr %s232, 8
      %s234 = scalar_lea.vmem %s0, %s233
      %p235 = pneg %p51
      %p236 = pneg %p48
      %p237 = scmp.lt.s32.totalorder %s20, 1
      %s238 = scalar_select %p237, %s20, 1
      %s239 = smul.addr %s238, 8
      %s240 = scalar_lea.vmem %s1, %s239
      %p241 = pneg %p77
      %p242 = pneg %p74
      %p243 = scmp.lt.s32.totalorder %s20, 1
      %s244 = scalar_select %p243, %s20, 1
      %s245 = scalar_lea.vmem %s2, %s244
      %p246 = pneg %p103
      %p247 = pneg %p100
      %p248 = pneg %p124
      %p249 = pneg %p121
      %p250 = pneg %p145
      %p251 = pneg %p142
      %p252 = pneg %p173
      %p253 = pneg %p170
      %p254 = scmp.lt.s32.totalorder %s20, 1
      %s255 = scalar_select %p254, %s20, 1
      %p256 = scmp.lt.s32.totalorder %s21, 0
      %s257 = scalar_select %p256, %s21, 0
      %s258 = sadd.s32 %s257, %s255
      %s259 = smul.addr %s258, 8
      %s260 = scalar_lea.vmem %s5, %s259
      %p261 = scmp.lt.s32.totalorder %s20, 1
      %s262 = scalar_select %p261, %s20, 1
      %p263 = scmp.lt.s32.totalorder %s21, 0
      %s264 = scalar_select %p263, %s21, 0
      %s265 = sadd.s32 %s264, %s262
      %s266 = smul.addr %s265, 8
      %s267 = scalar_lea.vmem %s0, %s266
      %p268 = scmp.lt.s32.totalorder %s20, 1
      %s269 = scalar_select %p268, %s20, 1
      %s270 = smul.addr %s269, 8
      %s271 = scalar_lea.vmem %s1, %s270
      %p272 = scmp.lt.s32.totalorder %s20, 1
      %s273 = scalar_select %p272, %s20, 1
      %s274 = scalar_lea.vmem %s2, %s273
      %p275 = scmp.lt.s32.totalorder %s20, 1
      %s276 = scalar_select %p275, %s20, 1
      %p277 = scmp.lt.s32.totalorder %s21, 0
      %s278 = scalar_select %p277, %s21, 0
      %s279 = sadd.s32 %s278, %s276
      %s280 = smul.addr %s279, 8
      %s281 = scalar_lea.vmem %s5, %s280
      %v282 = vld [vmem:[%s3] sm:$0xff]
      %v283 = vld [vmem:[%s3 + $0x8] sm:$0xff]
      %v284 = vld [vmem:[%s3 + $0x10] sm:$0xff]
      %v285 = vld [vmem:[%s3 + $0x18] sm:$0xff]
      %v286 = vld [vmem:[%s4] sm:$0x1]
      %p287 = scmp.eq.s32.totalorder %s21, 0
      // Predicated region
      $region41: #{unidir_atten_concat.1} parent=39 // pred_check
        %p288 = pneg %p287
      $region42: #{unidir_atten_concat.1} parent=39 // pred_check_branch
        %290 = sbr.rel (%p288) target = $region44
      $region43: #{unidir_atten_concat.1} parent=39 // pred_region
        %v291 = vld [vmem:[%s271] sm:$0xff]
        %v293 = vlaneseq
        %v294 = vshrl.u32 %v293, 7
        %v295 = vsub.s32 0, %v294
        %v296 = vrot.slane %v286, %v295
        %vm298 = vcmask 261120
        %v300 = vsel %vm298, %v291, 0
        %302 = vmatprep.subr.mxu0 0.0
        %303 = vmatpush1.msra.mxu0 0.0
        %304 = vmatprep.subr.mxu0 0.0
        %305 = vmatpush1.msra.mxu0 0.0
        %306 = vmatprep.subr.mxu0 0.0
        %307 = vmatpush1.msra.mxu0 0.0
        %308 = vmatprep.subr.mxu0 0.0
        %309 = vmatpush1.msra.mxu0 0.0
        %310 = vmatprep.subr.mxu0 0.0
        %311 = vmatpush1.msra.mxu0 0.0
        %312 = vmatprep.subr.mxu0 0.0
        %313 = vmatpush1.msra.mxu0 0.0
        %314 = vmatprep.subr.mxu0 0.0
        %315 = vmatpush1.msra.mxu0 0.0
        %316 = vmatprep.subr.mxu0 0.0
        %317 = vmatpush1.msra.mxu0 0.0
        %318 = vmatprep.subr.mxu0 0.0
        %319 = vmatpush1.msra.mxu0 0.0
        %320 = vmatprep.subr.mxu0 0.0
        %321 = vmatpush1.msra.mxu0 0.0
        %322 = vmatprep.subr.mxu0 0.0
        %323 = vmatpush1.msra.mxu0 0.0
        %324 = vmatprep.subr.mxu0 0.0
        %325 = vmatpush1.msra.mxu0 0.0
        %326 = vmatprep.subr.mxu0 0.0
        %327 = vmatpush1.msra.mxu0 %v285
        %328 = vmatprep.subr.mxu0 0.0
        %329 = vmatpush1.msra.mxu0 %v284
        %330 = vmatprep.subr.mxu0 0.0
        %331 = vmatpush1.msra.mxu0 %v283
        %332 = vmatprep.subr.mxu0 0.0
        %333 = vmatpush1.msra.mxu0 %v282
        %334 = vmatprep.subr.mxu0 0.0
        %335 = vmatpush2.msra.mxu0 0.0
        %336 = vmatprep.subr.mxu0 0.0
        %337 = vmatpush2.msra.mxu0 0.0
        %338 = vmatprep.subr.mxu0 0.0
        %339 = vmatpush2.msra.mxu0 0.0
        %340 = vmatprep.subr.mxu0 0.0
        %341 = vmatpush2.msra.mxu0 0.0
        %342 = vmatprep.subr.mxu0 0.0
        %343 = vmatpush2.msra.mxu0 0.0
        %344 = vmatprep.subr.mxu0 0.0
        %345 = vmatpush2.msra.mxu0 0.0
        %346 = vmatprep.subr.mxu0 0.0
        %347 = vmatpush2.msra.mxu0 0.0
        %348 = vmatprep.subr.mxu0 0.0
        %349 = vmatpush2.msra.mxu0 0.0
        %350 = vmatprep.subr.mxu0 0.0
        %351 = vmatpush2.msra.mxu0 0.0
        %352 = vmatprep.subr.mxu0 0.0
        %353 = vmatpush2.msra.mxu0 0.0
        %354 = vmatprep.subr.mxu0 0.0
        %355 = vmatpush2.msra.mxu0 0.0
        %356 = vmatprep.subr.mxu0 0.0
        %357 = vmatpush2.msra.mxu0 0.0
        %358 = vmatprep.subr.mxu0 0.0
        %359 = vmatpush2.msra.mxu0 0.0
        %360 = vmatprep.subr.mxu0 0.0
        %361 = vmatpush2.msra.mxu0 0.0
        %362 = vmatprep.subr.mxu0 0.0
        %363 = vmatpush2.msra.mxu0 0.0
        %364 = vmatprep.subr.mxu0 0.0
        %365 = vmatpush2.msra.mxu0 0.0
        %366 = vmatprep.mubr.f32.mxu0 0.0
        %367 = vmatmul.mubr.f32.gmra.mxu0 %v300
        %v368 = vpop.f32.mrf.mxu0
        %v369 = vadd.f32 %v296, %v368
        %v370 = vpop.f32.mrf.mxu0
        %371 = vdwg.mxu0
        %v372 = vmax.f32 %v369, 0.0
        %373 = vst.msk [vmem:[#allocation2] sm:$0xff] %vm298, %v372
      $region44: #{unidir_atten_concat.1} parent=39 // pred_fallthru
        _
      %v374 = vld [vmem:[%s267] sm:$0xff]
      %v376 = vlaneseq
      %v377 = vshrl.u32 %v376, 7
      %v378 = vsub.s32 0, %v377
      %v379 = vrot.slane %v286, %v378
      %vm381 = vcmask 261120
      %v383 = vsel %vm381, %v374, 0
      %385 = vmatprep.subr.mxu0 0.0
      %386 = vmatpush1.msra.mxu0 0.0
      %387 = vmatprep.subr.mxu0 0.0
      %388 = vmatpush1.msra.mxu0 0.0
      %389 = vmatprep.subr.mxu0 0.0
      %390 = vmatpush1.msra.mxu0 0.0
      %391 = vmatprep.subr.mxu0 0.0
      %392 = vmatpush1.msra.mxu0 0.0
      %393 = vmatprep.subr.mxu0 0.0
      %394 = vmatpush1.msra.mxu0 0.0
      %395 = vmatprep.subr.mxu0 0.0
      %396 = vmatpush1.msra.mxu0 0.0
      %397 = vmatprep.subr.mxu0 0.0
      %398 = vmatpush1.msra.mxu0 0.0
      %399 = vmatprep.subr.mxu0 0.0
      %400 = vmatpush1.msra.mxu0 0.0
      %401 = vmatprep.subr.mxu0 0.0
      %402 = vmatpush1.msra.mxu0 0.0
      %403 = vmatprep.subr.mxu0 0.0
      %404 = vmatpush1.msra.mxu0 0.0
      %405 = vmatprep.subr.mxu0 0.0
      %406 = vmatpush1.msra.mxu0 0.0
      %407 = vmatprep.subr.mxu0 0.0
      %408 = vmatpush1.msra.mxu0 0.0
      %409 = vmatprep.subr.mxu0 0.0
      %410 = vmatpush1.msra.mxu0 %v285
      %411 = vmatprep.subr.mxu0 0.0
      %412 = vmatpush1.msra.mxu0 %v284
      %413 = vmatprep.subr.mxu0 0.0
      %414 = vmatpush1.msra.mxu0 %v283
      %415 = vmatprep.subr.mxu0 0.0
      %416 = vmatpush1.msra.mxu0 %v282
      %417 = vmatprep.subr.mxu0 0.0
      %418 = vmatpush2.msra.mxu0 0.0
      %419 = vmatprep.subr.mxu0 0.0
      %420 = vmatpush2.msra.mxu0 0.0
      %421 = vmatprep.subr.mxu0 0.0
      %422 = vmatpush2.msra.mxu0 0.0
      %423 = vmatprep.subr.mxu0 0.0
      %424 = vmatpush2.msra.mxu0 0.0
      %425 = vmatprep.subr.mxu0 0.0
      %426 = vmatpush2.msra.mxu0 0.0
      %427 = vmatprep.subr.mxu0 0.0
      %428 = vmatpush2.msra.mxu0 0.0
      %429 = vmatprep.subr.mxu0 0.0
      %430 = vmatpush2.msra.mxu0 0.0
      %431 = vmatprep.subr.mxu0 0.0
      %432 = vmatpush2.msra.mxu0 0.0
      %433 = vmatprep.subr.mxu0 0.0
      %434 = vmatpush2.msra.mxu0 0.0
      %435 = vmatprep.subr.mxu0 0.0
      %436 = vmatpush2.msra.mxu0 0.0
      %437 = vmatprep.subr.mxu0 0.0
      %438 = vmatpush2.msra.mxu0 0.0
      %439 = vmatprep.subr.mxu0 0.0
      %440 = vmatpush2.msra.mxu0 0.0
      %441 = vmatprep.subr.mxu0 0.0
      %442 = vmatpush2.msra.mxu0 0.0
      %443 = vmatprep.subr.mxu0 0.0
      %444 = vmatpush2.msra.mxu0 0.0
      %445 = vmatprep.subr.mxu0 0.0
      %446 = vmatpush2.msra.mxu0 0.0
      %447 = vmatprep.subr.mxu0 0.0
      %448 = vmatpush2.msra.mxu0 0.0
      %449 = vmatprep.mubr.f32.mxu0 0.0
      %450 = vmatmul.mubr.f32.gmra.mxu0 %v383
      %v451 = vpop.f32.mrf.mxu0
      %v452 = vadd.f32 %v379, %v451
      %v453 = vpop.f32.mrf.mxu0
      %454 = vdwg.mxu0
      %v455 = vmax.f32 %v452, 0.0
      %v456 = vld [vmem:[#allocation2] sm:$0xff]
      %v457 = vld [vmem:[%s274] sm:$0x1]
      %v459 = vlaneseq
      %v460 = vshrl.u32 %v459, 7
      %v461 = vsub.s32 0, %v460
      %v462 = vrot.slane %v457, %v461
      %v465 = vsel %vm381, %v455, 0
      %v468 = vsel %vm381, %v456, 0
      %470 = vmatprep.subr.mxu0 0.0
      %471 = vmatpush1.xpose.msra.mxu0 0.0
      %472 = vmatprep.subr.mxu0 0.0
      %473 = vmatpush1.xpose.msra.mxu0 0.0
      %474 = vmatprep.subr.mxu0 0.0
      %475 = vmatpush1.xpose.msra.mxu0 0.0
      %476 = vmatprep.subr.mxu0 0.0
      %477 = vmatpush1.xpose.msra.mxu0 0.0
      %478 = vmatprep.subr.mxu0 0.0
      %479 = vmatpush1.xpose.msra.mxu0 0.0
      %480 = vmatprep.subr.mxu0 0.0
      %481 = vmatpush1.xpose.msra.mxu0 0.0
      %482 = vmatprep.subr.mxu0 0.0
      %483 = vmatpush1.xpose.msra.mxu0 0.0
      %484 = vmatprep.subr.mxu0 0.0
      %485 = vmatpush1.xpose.msra.mxu0 0.0
      %486 = vmatprep.subr.mxu0 0.0
      %487 = vmatpush1.xpose.msra.mxu0 0.0
      %488 = vmatprep.subr.mxu0 0.0
      %489 = vmatpush1.xpose.msra.mxu0 0.0
      %490 = vmatprep.subr.mxu0 0.0
      %491 = vmatpush1.xpose.msra.mxu0 0.0
      %492 = vmatprep.subr.mxu0 0.0
      %493 = vmatpush1.xpose.msra.mxu0 0.0
      %494 = vmatprep.subr.mxu0 0.0
      %495 = vmatpush1.xpose.msra.mxu0 0.0
      %496 = vmatprep.subr.mxu0 0.0
      %497 = vmatpush1.xpose.msra.mxu0 0.0
      %498 = vmatprep.subr.mxu0 0.0
      %499 = vmatpush1.xpose.msra.mxu0 0.0
      %500 = vmatprep.subr.mxu0 0.0
      %501 = vmatpush1.xpose.msra.mxu0 %v468
      %502 = vmatprep.subr.mxu0 0.0
      %503 = vmatpush2.xpose.msra.mxu0 0.0
      %504 = vmatprep.subr.mxu0 0.0
      %505 = vmatpush2.xpose.msra.mxu0 0.0
      %506 = vmatprep.subr.mxu0 0.0
      %507 = vmatpush2.xpose.msra.mxu0 0.0
      %508 = vmatprep.subr.mxu0 0.0
      %509 = vmatpush2.xpose.msra.mxu0 0.0
      %510 = vmatprep.subr.mxu0 0.0
      %511 = vmatpush2.xpose.msra.mxu0 0.0
      %512 = vmatprep.subr.mxu0 0.0
      %513 = vmatpush2.xpose.msra.mxu0 0.0
      %514 = vmatprep.subr.mxu0 0.0
      %515 = vmatpush2.xpose.msra.mxu0 0.0
      %516 = vmatprep.subr.mxu0 0.0
      %517 = vmatpush2.xpose.msra.mxu0 0.0
      %518 = vmatprep.subr.mxu0 0.0
      %519 = vmatpush2.xpose.msra.mxu0 0.0
      %520 = vmatprep.subr.mxu0 0.0
      %521 = vmatpush2.xpose.msra.mxu0 0.0
      %522 = vmatprep.subr.mxu0 0.0
      %523 = vmatpush2.xpose.msra.mxu0 0.0
      %524 = vmatprep.subr.mxu0 0.0
      %525 = vmatpush2.xpose.msra.mxu0 0.0
      %526 = vmatprep.subr.mxu0 0.0
      %527 = vmatpush2.xpose.msra.mxu0 0.0
      %528 = vmatprep.subr.mxu0 0.0
      %529 = vmatpush2.xpose.msra.mxu0 0.0
      %530 = vmatprep.subr.mxu0 0.0
      %531 = vmatpush2.xpose.msra.mxu0 0.0
      %532 = vmatprep.subr.mxu0 0.0
      %533 = vmatpush2.xpose.msra.mxu0 0.0
      %534 = vmatprep.mubr.f32.mxu0 0.0
      %535 = vmatmul.mubr.f32.gmra.mxu0 %v465
      %v536 = vpop.f32.mrf.mxu0
      %v537 = vadd.f32 %v462, %v536
      %v538 = vpop.f32.mrf.mxu0
      %539 = vdwg.mxu0
      %vm540 = vcmask 64512
      %v541 = vsel %vm540, %v537, -inf
      %542 = vmax.xlane.f32.xlu0 %v541
      %v543 = vpop.xlane.xlu0 %542
      %v544 = vsub.f32 %v537, %v543
      %v545 = vmul.f32 %v544, 1.442695
      %v546 = vpow.pop %v545
      %v547 = vsel %vm540, %v546, 0.0
      %548 = vadd.xlane.f32.xlu0 %v547
      %v549 = vpop.xlane.xlu0 %548
      %v550 = vrcp.pop %v549
      %v551 = vmul.f32 %v546, %v550
      %v552 = vld [vmem:[%s271] sm:$0xff]
      %v554 = vsel %vm540, %v551, 0
      %556 = vmatprep.subr.mxu0 0.0
      %557 = vmatpush1.msra.mxu0 0.0
      %558 = vmatprep.subr.mxu0 0.0
      %559 = vmatpush1.msra.mxu0 0.0
      %560 = vmatprep.subr.mxu0 0.0
      %561 = vmatpush1.msra.mxu0 0.0
      %562 = vmatprep.subr.mxu0 0.0
      %563 = vmatpush1.msra.mxu0 0.0
      %564 = vmatprep.subr.mxu0 0.0
      %565 = vmatpush1.msra.mxu0 0.0
      %566 = vmatprep.subr.mxu0 0.0
      %567 = vmatpush1.msra.mxu0 0.0
      %568 = vmatprep.subr.mxu0 0.0
      %569 = vmatpush1.msra.mxu0 0.0
      %570 = vmatprep.subr.mxu0 0.0
      %571 = vmatpush1.msra.mxu0 0.0
      %572 = vmatprep.subr.mxu0 0.0
      %573 = vmatpush1.msra.mxu0 0.0
      %574 = vmatprep.subr.mxu0 0.0
      %575 = vmatpush1.msra.mxu0 0.0
      %576 = vmatprep.subr.mxu0 0.0
      %577 = vmatpush1.msra.mxu0 0.0
      %578 = vmatprep.subr.mxu0 0.0
      %579 = vmatpush1.msra.mxu0 0.0
      %580 = vmatprep.subr.mxu0 0.0
      %581 = vmatpush1.msra.mxu0 0.0
      %582 = vmatprep.subr.mxu0 0.0
      %583 = vmatpush1.msra.mxu0 0.0
      %584 = vmatprep.subr.mxu0 0.0
      %585 = vmatpush1.msra.mxu0 0.0
      %586 = vmatprep.subr.mxu0 0.0
      %587 = vmatpush1.msra.mxu0 %v552
      %588 = vmatprep.subr.mxu0 0.0
      %589 = vmatpush2.msra.mxu0 0.0
      %590 = vmatprep.subr.mxu0 0.0
      %591 = vmatpush2.msra.mxu0 0.0
      %592 = vmatprep.subr.mxu0 0.0
      %593 = vmatpush2.msra.mxu0 0.0
      %594 = vmatprep.subr.mxu0 0.0
      %595 = vmatpush2.msra.mxu0 0.0
      %596 = vmatprep.subr.mxu0 0.0
      %597 = vmatpush2.msra.mxu0 0.0
      %598 = vmatprep.subr.mxu0 0.0
      %599 = vmatpush2.msra.mxu0 0.0
      %600 = vmatprep.subr.mxu0 0.0
      %601 = vmatpush2.msra.mxu0 0.0
      %602 = vmatprep.subr.mxu0 0.0
      %603 = vmatpush2.msra.mxu0 0.0
      %604 = vmatprep.subr.mxu0 0.0
      %605 = vmatpush2.msra.mxu0 0.0
      %606 = vmatprep.subr.mxu0 0.0
      %607 = vmatpush2.msra.mxu0 0.0
      %608 = vmatprep.subr.mxu0 0.0
      %609 = vmatpush2.msra.mxu0 0.0
      %610 = vmatprep.subr.mxu0 0.0
      %611 = vmatpush2.msra.mxu0 0.0
      %612 = vmatprep.subr.mxu0 0.0
      %613 = vmatpush2.msra.mxu0 0.0
      %614 = vmatprep.subr.mxu0 0.0
      %615 = vmatpush2.msra.mxu0 0.0
      %616 = vmatprep.subr.mxu0 0.0
      %617 = vmatpush2.msra.mxu0 0.0
      %618 = vmatprep.subr.mxu0 0.0
      %619 = vmatpush2.msra.mxu0 0.0
      %620 = vmatprep.mubr.f32.mxu0 0.0
      %621 = vmatmul.mubr.f32.gmra.mxu0 %v554
      %v622 = vpop.f32.mrf.mxu0
      %v623 = vadd.f32 0.0, %v622
      %v624 = vpop.f32.mrf.mxu0
      %625 = vdwg.mxu0
      %626 = vst.msk [vmem:[%s281] sm:$0xff] %vm381, %v623
      %p627 = scmp.lt.s32.totalorder %s20, 1
      %s628 = scalar_select %p627, %s20, 1
      %p629 = scmp.lt.s32.totalorder %s21, 0
      %s630 = scalar_select %p629, %s21, 0
      %s631 = sadd.s32 %s630, %s628
      %s632 = smul.addr %s631, 8
      %s633 = scalar_lea.vmem %s5, %s632
      // Predicated region
      $region45: #{unidir_atten_concat.1} parent=39 // pred_check
        %p634 = pneg %p170
      $region46: #{unidir_atten_concat.1} parent=39 // pred_check_branch
        %636 = sbr.rel (%p634) target = $region48
      $region47: #{unidir_atten_concat.1} parent=39 // pred_region
        _
      $region48: #{unidir_atten_concat.1} parent=39 // pred_fallthru
        _
    $region40: #{unidir_atten_concat.1} parent=5 // pred_fallthru
      _
    %p637 = scmp.le.s32.totalorder 2, %s11
    // Predicated region
    $region49: #{unidir_atten_concat.1} parent=5 // pred_check
      %p638 = pneg %p637
    $region50: #{unidir_atten_concat.1} parent=5 // pred_check_branch
      %640 = sbr.rel (%p638) target = $region52
    $region51: #{unidir_atten_concat.1} parent=5 // pred_region
      %s641 = ssub.s32 %s11, 2
      // Predicated region
      $region53: #{unidir_atten_concat.1} parent=51 // pred_check
        %p642 = pneg %p176
      $region54: #{unidir_atten_concat.1} parent=51 // pred_check_branch
        %644 = sbr.rel (%p642) target = $region56
      $region55: #{unidir_atten_concat.1} parent=51 // pred_region
        %p645 = scmp.lt.s32.totalorder %s22, 1
        %s646 = scalar_select %p645, %s22, 1
        %p647 = scmp.lt.s32.totalorder %s23, 0
        %s648 = scalar_select %p647, %s23, 0
        %s649 = sadd.s32 %s648, %s646
        %s650 = smul.addr %s649, 8
        %s651 = scalar_lea.vmem %s5, %s650
      $region56: #{unidir_atten_concat.1} parent=51 // pred_fallthru
        _
    $region52: #{unidir_atten_concat.1} parent=5 // pred_fallthru
      _
  $region6: #{unidir_atten_concat.1} parent=0 // loop_footer
    %s15 = sadd.s32 1, %s11
  $region7: #{unidir_atten_concat.1} parent=0 // loop_footer_branch
    %10 = sbr.rel target = $region3
  $region8: #{unidir_atten_concat.1} parent=0 // loop_exit
    _

</llo_original>
